<compile_context>
chip_gen: v7x
topology: tpu7x:2x2x1
jax: 0.10.0
libtpu: 0.0.40
codegen_flags: <defaults>
</compile_context>

<pallas_src>
import functools

import jax
import jax.numpy as jnp
from jax import lax
from jax.experimental import pallas as pl
from jax.experimental.pallas import tpu as pltpu


def _dropout_kernel(seed_ref, x_ref, o_ref, *,
                    keep_prob: float, block_rows: int, block_cols: int,
                    total_cols: int):
    i = pl.program_id(0)
    j = pl.program_id(1)
    shape = x_ref.shape

    # Global (row, col) of every element of this tile -> unique per-element counter.
    row = lax.broadcasted_iota(jnp.int32, shape, 0) + i * block_rows
    col = lax.broadcasted_iota(jnp.int32, shape, 1) + j * block_cols
    idx = row.astype(jnp.uint32) * jnp.uint32(total_cols) + col.astype(jnp.uint32)

    # Counter-based hash (murmur3 finalizer) of (index, seed) -> uniform 32 bits.
    seed = seed_ref[0].astype(jnp.uint32)
    h = idx + seed * jnp.uint32(0x9E3779B9)
    h = h ^ (h >> jnp.uint32(16))
    h = h * jnp.uint32(0x85EBCA6B)
    h = h ^ (h >> jnp.uint32(13))
    h = h * jnp.uint32(0xC2B2AE35)
    h = h ^ (h >> jnp.uint32(16))

    # Bernoulli(keep_prob) via integer threshold compare. Drop one bit so the
    # compare runs on int32 values in [0, 2^31) (signed compare, always lowers).
    r = (h >> jnp.uint32(1)).astype(jnp.int32)
    thr = jnp.int32(min(int(keep_prob * 2147483648.0), 2147483647))

    # Inverted-dropout scaling in f32, single cast at the store.
    scale = jnp.float32(1.0 / keep_prob)
    xf = x_ref[...].astype(jnp.float32)
    o_ref[...] = jnp.where(r < thr, xf * scale, jnp.float32(0.0)).astype(o_ref.dtype)


def dropout(x: jax.Array, seed: int, p: float = 0.5, training: bool = True,
            block_rows: int = 512, block_cols: int = 1024) -> jax.Array:
    """Pallas TPU dropout matching the PyTorch module's forward pass."""
    if not training or p == 0.0:
        return x  # eval mode / p=0: identity
    keep_prob = 1.0 - p

    orig_shape = x.shape
    if x.ndim != 2:
        x = x.reshape((-1, orig_shape[-1]))
    rows, cols = x.shape

    # Lane-dense tiling: last block dim is a multiple of 128 (or the full dim),
    # second-to-last a multiple of 8 (or the full dim). Partial edge blocks are
    # fine for an elementwise op.
    br = rows if rows <= block_rows else block_rows
    bc = cols if cols <= block_cols else block_cols
    grid = (pl.cdiv(rows, br), pl.cdiv(cols, bc))

    seed_arr = jnp.asarray([seed], dtype=jnp.int32)
    kernel = functools.partial(_dropout_kernel, keep_prob=keep_prob,
                               block_rows=br, block_cols=bc, total_cols=cols)

    out = pl.pallas_call(
        kernel,
        out_shape=jax.ShapeDtypeStruct((rows, cols), x.dtype),
        grid_spec=pltpu.PrefetchScalarGridSpec(
            num_scalar_prefetch=1,          # seed lands in SMEM
            grid=grid,
            in_specs=[pl.BlockSpec((br, bc), lambda i, j, s: (i, j))],
            out_specs=pl.BlockSpec((br, bc), lambda i, j, s: (i, j)),
        ),
        compiler_params=pltpu.CompilerParams(
            dimension_semantics=("parallel", "parallel")),
    )(seed_arr, x)
    return out.reshape(orig_shape)


if __name__ == "__main__":
    key = jax.random.PRNGKey(0)
    batch, hidden = 256, 512                 # small MLP activation, lane-aligned
    x = jax.random.normal(key, (batch, hidden), dtype=jnp.float32)

    p = 0.5
    # Training mode, tiled grid (2, 2): kernel generates the mask + scales by 1/(1-p).
    y_train = jax.block_until_ready(
        dropout(x, seed=1234, p=p, training=True, block_rows=128, block_cols=256))
    # Same seed, different tiling (grid (1, 1)): mask must be identical (grid-invariant hash).
    y_train2 = jax.block_until_ready(
        dropout(x, seed=1234, p=p, training=True, block_rows=256, block_cols=512))
    # Eval mode: identity, same as the PyTorch module.
    y_eval = jax.block_until_ready(dropout(x, seed=1234, p=p, training=False))

    # Kept elements are exactly x / (1-p), dropped ones are 0.
    kept = y_train != 0
    assert jnp.allclose(jnp.where(kept, y_train, 0.0),
                        jnp.where(kept, x / (1.0 - p), 0.0), atol=1e-5, rtol=1e-5)
    # Mask is independent of block size / grid shape.
    assert jnp.array_equal(y_train, y_train2)
    # Keep fraction ~ keep_prob.
    frac = float(jnp.mean(kept.astype(jnp.float32)))
    assert 0.45 < frac < 0.55, frac
    # Eval mode is the identity; shape/dtype preserved.
    assert jnp.allclose(y_eval, x)
    assert y_train.shape == x.shape and y_train.dtype == x.dtype

    print("KERNEL_OK")
</pallas_src>

<mosaic_0001>
module attributes {stable_mosaic.version = 11 : i64} {
  func.func @_dropout_kernel(%arg0: i32, %arg1: i32, %arg2: memref<1xi32, #tpu.memory_space<smem>>, %arg3: memref<128x256xf32, #tpu.memory_space<vmem>>, %arg4: memref<128x256xf32, #tpu.memory_space<vmem>>) attributes {dimension_semantics = [#tpu.dimension_semantics<parallel>, #tpu.dimension_semantics<parallel>], iteration_bounds = array<i64: 2, 2>, scalar_prefetch = 1 : i64, scratch_operands = 0 : i64, tpu.core_type = #tpu.core_type<tc>, window_params = [{transform_indices = @transform_0, window_bounds = array<i64: 128, 256>}, {transform_indices = @transform_1, window_bounds = array<i64: 128, 256>}]} {
    %0 = tpu.iota {dimensions = array<i32: 0>} : vector<128x256xi32>
    %c128_i32 = arith.constant 128 : i32
    %1 = arith.muli %arg0, %c128_i32 : i32
    %2 = vector.broadcast %1 : i32 to vector<128x256xi32>
    %3 = arith.addi %0, %2 : vector<128x256xi32>
    %4 = tpu.iota {dimensions = array<i32: 1>} : vector<128x256xi32>
    %c256_i32 = arith.constant 256 : i32
    %5 = arith.muli %arg1, %c256_i32 : i32
    %6 = vector.broadcast %5 : i32 to vector<128x256xi32>
    %7 = arith.addi %4, %6 : vector<128x256xi32>
    %c512_i32 = arith.constant 512 : i32
    %8 = vector.broadcast %c512_i32 : i32 to vector<128x256xi32>
    %9 = arith.muli %3, %8 : vector<128x256xi32>
    %10 = arith.addi %9, %7 : vector<128x256xi32>
    %c0 = arith.constant 0 : index
    %11 = memref.load %arg2[%c0] : memref<1xi32, #tpu.memory_space<smem>>
    %c-1640531527_i32 = arith.constant -1640531527 : i32
    %12 = arith.muli %11, %c-1640531527_i32 : i32
    %13 = vector.broadcast %12 : i32 to vector<128x256xi32>
    %14 = arith.addi %10, %13 : vector<128x256xi32>
    %c16_i32 = arith.constant 16 : i32
    %15 = vector.broadcast %c16_i32 : i32 to vector<128x256xi32>
    %16 = arith.shrui %14, %15 : vector<128x256xi32>
    %17 = arith.xori %14, %16 : vector<128x256xi32>
    %c-2048144789_i32 = arith.constant -2048144789 : i32
    %18 = vector.broadcast %c-2048144789_i32 : i32 to vector<128x256xi32>
    %19 = arith.muli %17, %18 : vector<128x256xi32>
    %c13_i32 = arith.constant 13 : i32
    %20 = vector.broadcast %c13_i32 : i32 to vector<128x256xi32>
    %21 = arith.shrui %19, %20 : vector<128x256xi32>
    %22 = arith.xori %19, %21 : vector<128x256xi32>
    %c-1028477387_i32 = arith.constant -1028477387 : i32
    %23 = vector.broadcast %c-1028477387_i32 : i32 to vector<128x256xi32>
    %24 = arith.muli %22, %23 : vector<128x256xi32>
    %c16_i32_0 = arith.constant 16 : i32
    %25 = vector.broadcast %c16_i32_0 : i32 to vector<128x256xi32>
    %26 = arith.shrui %24, %25 : vector<128x256xi32>
    %27 = arith.xori %24, %26 : vector<128x256xi32>
    %c1_i32 = arith.constant 1 : i32
    %28 = vector.broadcast %c1_i32 : i32 to vector<128x256xi32>
    %29 = arith.shrui %27, %28 : vector<128x256xi32>
    %c0_1 = arith.constant 0 : index
    %c0_2 = arith.constant 0 : index
    %30 = vector.load %arg3[%c0_1, %c0_2] : memref<128x256xf32, #tpu.memory_space<vmem>>, vector<128x256xf32>
    %c1073741824_i32 = arith.constant 1073741824 : i32
    %31 = vector.broadcast %c1073741824_i32 : i32 to vector<128x256xi32>
    %32 = arith.cmpi slt, %29, %31 : vector<128x256xi32>
    %cst = arith.constant 2.000000e+00 : f32
    %33 = vector.broadcast %cst : f32 to vector<128x256xf32>
    %34 = arith.mulf %30, %33 : vector<128x256xf32>
    %cst_3 = arith.constant 0.000000e+00 : f32
    %35 = vector.broadcast %cst_3 : f32 to vector<128x256xf32>
    %36 = arith.select %32, %34, %35 : vector<128x256xi1>, vector<128x256xf32>
    %c0_4 = arith.constant 0 : index
    %c0_5 = arith.constant 0 : index
    %37 = vector.load %arg4[%c0_4, %c0_5] : memref<128x256xf32, #tpu.memory_space<vmem>>, vector<128x256xf32>
    tpu.vector_store %arg4[%c0_4, %c0_5], %36 {strides = array<i32>} : memref<128x256xf32, #tpu.memory_space<vmem>>, vector<128x256xf32>,
    return
  }
  func.func @transform_0(%arg0: i32, %arg1: i32, %arg2: memref<1xi32, #tpu.memory_space<smem>>) -> (i32, i32) {
    %c0_i32 = arith.constant 0 : i32
    return %arg0, %arg1 : i32, i32
  }
  func.func @transform_1(%arg0: i32, %arg1: i32, %arg2: memref<1xi32, #tpu.memory_space<smem>>) -> (i32, i32) {
    %c0_i32 = arith.constant 0 : i32
    return %arg0, %arg1 : i32, i32
  }
}

</mosaic_0001>

<llo_original>
// kernel: tpu_custom_call.1
$region0: #{tpu_custom_call.1}
  #allocation0 [shape = 'u32[]', space=smem, size = 0x4, offset = 0x4, fixed_abs, tag = 'smem constant byte address 0x4 - core index']
  #allocation1 [shape = 'u32[144,128]{1,0:T(1,128)}', space=vmem, size = 0x12000, scoped, tag = 'internal scratch']
  #allocation2 [shape = 's32[1]{0}', space=sflag, size = 0x4, scoped, tag = 'scoped memory for tpu_custom_call.1']
  #allocation3 [shape = 's32[1]{0:T(128)S(6)}', space=smem, size = 0x200, scoped, tag = 'prefetched SMEM operand 0']
  %s0 = inlined_call_operand.<no memory space> [shape: s32[1], index: 0, kind: input, shape index: {}]
  %s1 = inlined_call_operand.hbm [shape: f32[256,512], index: 1, kind: input, shape index: {}]
  %s2 = inlined_call_operand.hbm [shape: f32[256,512], index: 2, kind: output, shape index: {}]
  %s3 = sld [smem:[#allocation0]]
  $region41: #{tpu_custom_call.1} parent=0
    _
  %s5 = ssub.s32 1, %s3
  %s6 = scalar_select 0, %s5, %s3
  %7 = sst [smem:[#allocation3]] %s0
  $region1: #{tpu_custom_call.1} parent=0
    #allocation4 [shape = 'u8[262144]{0}', space=vmem, size = 0x40000, scoped, tag = 'input window, operand 1']
    #allocation5 [shape = 's32[2]{0}', space=sflag, size = 0x8, scoped, tag = 'scoped memory for tpu_custom_call.1']
    #allocation6 [shape = 's32[2]{0}', space=sflag, size = 0x8, scoped, tag = 'scoped memory for tpu_custom_call.1']
    #allocation7 [shape = 'u8[262144]{0}', space=vmem, size = 0x40000, scoped, tag = 'output window, operand 0']
    %8 = vsyncpa [#allocation5], 0
    %s9 = scalar_lea.sflag [#allocation5], 1
    %10 = vsyncpa %s9, 0
    %11 = vsyncpa [#allocation6], 0
    %s12 = scalar_lea.sflag [#allocation6], 1
    %13 = vsyncpa %s12, 0
    loop: start=0, step=1, limit=6
    $region2: #{tpu_custom_call.1} parent=1 // loop_pre_header
      _
    $region3: #{tpu_custom_call.1} parent=1 // loop_header
      %s15 = sphi 0, %s19
      %p16 = scmp.ge.s32.totalorder %s15, 6
      %s22 = sphi 0, %s34
      %s23 = sphi 0, %s30
      %s24 = sphi 0, %s22
      %s25 = sphi 0, %s23
      %s26 = sphi 0, %s24
      %s27 = sphi 0, %s25
      %s39 = sphi 0, %s41
      %s42 = sphi 0, %s39
      %s43 = sphi 0, %s42
      %s59 = sphi 0, %s43
      %s67 = sphi 0, %s69
      %s70 = sphi 0, %s67
      %s71 = sphi 0, %s70
      %s87 = sphi 0, %s71
    $region4: #{tpu_custom_call.1} parent=1 // loop_header_branch
      %18 = sbr.rel (%p16) target = $region8
    $region5: #{tpu_custom_call.1} parent=1 // loop_body
      %s20 = ssub.s32 %s15, 1
      %s21 = ssub.s32 %s15, 2
      %s28 = sadd.s32 1, %s23
      %p29 = scmp.ge.s32.totalorder %s28, 2
      %s30 = scalar_select %p29, 0, %s28
      %s31 = sadd.s32 1, %s22
      %s32 = scalar_select %p29, %s31, %s22
      %p33 = scmp.ge.s32.totalorder %s32, 2
      %s34 = scalar_select %p33, 0, %s32
      %s35 = ssub.s32 %s22, %s34
      %s36 = ssub.s32 %s23, %s30
      %s37 = sor.u32 %s35, %s36
      %p38 = scmp.eq.s32.totalorder %s37, 0
      %s40 = sadd.s32 %s39, 1
      %s41 = scalar_select %p38, %s39, %s40
      %p44 = pneg %p38
      %p45 = scmp.eq.s32.totalorder %s15, 3
      %p46 = por %p44, %p45
      %p47 = scmp.ne.s32.totalorder %s39, %s42
      %p48 = scmp.eq.s32.totalorder %s15, 0
      %p49 = por %p47, %p48
      %p50 = scmp.ne.s32.totalorder %s39, %s42
      %p51 = scmp.eq.s32.totalorder %s20, 3
      %p52 = por %p50, %p51
      %p53 = scmp.ne.s32.totalorder %s42, %s43
      %p54 = scmp.eq.s32.totalorder %s20, 0
      %p55 = por %p53, %p54
      %p56 = scmp.ne.s32.totalorder %s42, %s43
      %p57 = scmp.eq.s32.totalorder %s21, 3
      %p58 = por %p56, %p57
      %p60 = scmp.ne.s32.totalorder %s43, %s59
      %p61 = scmp.eq.s32.totalorder %s21, 0
      %p62 = por %p60, %p61
      %s63 = ssub.s32 %s22, %s34
      %s64 = ssub.s32 %s23, %s30
      %s65 = sor.u32 %s63, %s64
      %p66 = scmp.eq.s32.totalorder %s65, 0
      %s68 = sadd.s32 %s67, 1
      %s69 = scalar_select %p66, %s67, %s68
      %p72 = pneg %p66
      %p73 = scmp.eq.s32.totalorder %s15, 3
      %p74 = por %p72, %p73
      %p75 = scmp.ne.s32.totalorder %s67, %s70
      %p76 = scmp.eq.s32.totalorder %s15, 0
      %p77 = por %p75, %p76
      %p78 = scmp.ne.s32.totalorder %s67, %s70
      %p79 = scmp.eq.s32.totalorder %s20, 3
      %p80 = por %p78, %p79
      %p81 = scmp.ne.s32.totalorder %s70, %s71
      %p82 = scmp.eq.s32.totalorder %s20, 0
      %p83 = por %p81, %p82
      %p84 = scmp.ne.s32.totalorder %s70, %s71
      %p85 = scmp.eq.s32.totalorder %s21, 3
      %p86 = por %p84, %p85
      %p88 = scmp.ne.s32.totalorder %s71, %s87
      %p89 = scmp.eq.s32.totalorder %s21, 0
      %p90 = por %p88, %p89
      %p91 = scmp.le.s32.totalorder 1, %s15
      %p92 = scmp.lt.s32.totalorder %s15, 5
      %p93 = pnand %p91, %p92
      %p94 = pneg %p93
      // Predicated region
      $region9: #{tpu_custom_call.1} parent=5 // pred_check
        _
      $region10: #{tpu_custom_call.1} parent=5 // pred_check_branch
        %96 = sbr.rel (%p93) target = $region12
      $region11: #{tpu_custom_call.1} parent=5 // pred_region
        %s97 = ssub.s32 %s15, 1
      $region12: #{tpu_custom_call.1} parent=5 // pred_fallthru
        _
      %p98 = scmp.lt.s32.totalorder %s15, 4
      // Predicated region
      $region13: #{tpu_custom_call.1} parent=5 // pred_check
        %p99 = pneg %p98
      $region14: #{tpu_custom_call.1} parent=5 // pred_check_branch
        %101 = sbr.rel (%p99) target = $region16
      $region15: #{tpu_custom_call.1} parent=5 // pred_region
        // Predicated region
        $region17: #{tpu_custom_call.1} parent=15 // pred_check
          %p102 = pneg %p49
        $region18: #{tpu_custom_call.1} parent=15 // pred_check_branch
          %104 = sbr.rel (%p102) target = $region20
        $region19: #{tpu_custom_call.1} parent=15 // pred_region
          %s105 = sand.u32 %s39, 1
          %s106 = scalar_lea.sflag [#allocation5], %s105
          %s107 = sand.u32 %s39, 1
          %s108 = smul.addr %s107, 256
          %s109 = scalar_lea.vmem [#allocation4], %s108
          %s110 = smul.u32 16, %s22
          %s111 = smul.u32 2, %s23
          %s113 = ssub.s32 4096, 4096
          %114 = vsyncadd %s106, %s113
          %s115 = smul.addr %s110, 4
          %s116 = sadd.s32 %s111, %s115
          %s117 = smul.addr %s116, 128
          %s118 = scalar_lea.hbm %s1, %s117
          %s119 = sshll.u32 %s109, 4
          %s120 = int_to_ptr.vmem [resolvable:$true] %s119
          %125 = dma.hbm_to_vmem [thread:$0]  %s118, 4096, %s120, %s106, 512, 256, 16
        $region20: #{tpu_custom_call.1} parent=15 // pred_fallthru
          _
      $region16: #{tpu_custom_call.1} parent=5 // pred_fallthru
        _
      %p126 = scmp.le.s32.totalorder 1, %s15
      %p127 = scmp.lt.s32.totalorder %s15, 5
      %p128 = pnand %p126, %p127
      %p129 = pneg %p128
      // Predicated region
      $region21: #{tpu_custom_call.1} parent=5 // pred_check
        _
      $region22: #{tpu_custom_call.1} parent=5 // pred_check_branch
        %131 = sbr.rel (%p128) target = $region24
      $region23: #{tpu_custom_call.1} parent=5 // pred_region
        %s132 = ssub.s32 %s15, 1
        %s133 = sand.u32 %s42, 1
        %s134 = scalar_lea.sflag [#allocation5], %s133
        %s135 = sand.u32 %s42, 1
        %s136 = smul.addr %s135, 256
        %s137 = scalar_lea.vmem [#allocation4], %s136
        // Predicated region
        $region25: #{tpu_custom_call.1} parent=23 // pred_check
          %p138 = pneg %p55
        $region26: #{tpu_custom_call.1} parent=23 // pred_check_branch
          %140 = sbr.rel (%p138) target = $region28
        $region27: #{tpu_custom_call.1} parent=23 // pred_region
          %141 = dma.done %s134, 4096
        $region28: #{tpu_custom_call.1} parent=23 // pred_fallthru
          _
        %s142 = sand.u32 %s42, 1
        %s143 = scalar_lea.sflag [#allocation5], %s142
        %s144 = sand.u32 %s42, 1
        %s145 = smul.addr %s144, 256
        %s146 = scalar_lea.vmem [#allocation4], %s145
        %p147 = pneg %p55
        %p148 = pneg %p52
        %p149 = pneg %p83
        %p150 = pneg %p80
        %s151 = sand.u32 %s70, 1
        %s152 = scalar_lea.sflag [#allocation6], %s151
        %s153 = sand.u32 %s70, 1
        %s154 = smul.addr %s153, 256
        %s155 = scalar_lea.vmem [#allocation7], %s154
        %s156 = smul.u32 16, %s24
        %s157 = smul.u32 2, %s25
        %s158 = smul.u32 16, %s24
        %s159 = smul.u32 2, %s25
        %v160 = vlaneseq
        %v161 = vshrl.u32 %v160, 7
        %v162 = vadd.s32 %v161, 8
        %v163 = vadd.s32 %v161, 16
        %v164 = vadd.s32 %v161, 24
        %v165 = vadd.s32 %v161, 32
        %v166 = vadd.s32 %v161, 40
        %v167 = vadd.s32 %v161, 48
        %v168 = vadd.s32 %v161, 56
        %v169 = vadd.s32 %v161, 64
        %v170 = vadd.s32 %v161, 72
        %v171 = vadd.s32 %v161, 80
        %v172 = vadd.s32 %v161, 88
        %v173 = vadd.s32 %v161, 96
        %v174 = vadd.s32 %v161, 104
        %v175 = vadd.s32 %v161, 112
        %v176 = vadd.s32 %v161, 120
        %s177 = smul.u32 %s24, 128
        %v178 = vstv %s177
        %v179 = vadd.s32 %v161, %v178
        %v180 = vadd.s32 %v162, %v178
        %v181 = vadd.s32 %v163, %v178
        %v182 = vadd.s32 %v164, %v178
        %v183 = vadd.s32 %v165, %v178
        %v184 = vadd.s32 %v166, %v178
        %v185 = vadd.s32 %v167, %v178
        %v186 = vadd.s32 %v168, %v178
        %v187 = vadd.s32 %v169, %v178
        %v188 = vadd.s32 %v170, %v178
        %v189 = vadd.s32 %v171, %v178
        %v190 = vadd.s32 %v172, %v178
        %v191 = vadd.s32 %v173, %v178
        %v192 = vadd.s32 %v174, %v178
        %v193 = vadd.s32 %v175, %v178
        %v194 = vadd.s32 %v176, %v178
        %v195 = vlaneseq
        %v196 = vand.u32 %v195, 127
        %v197 = vadd.s32 %v196, 128
        %s198 = smul.u32 %s25, 256
        %v199 = vstv %s198
        %v200 = vadd.s32 %v196, %v199
        %v201 = vadd.s32 %v197, %v199
        %v202 = vmul.u32 %v179, 512
        %v203 = vmul.u32 %v180, 512
        %v204 = vmul.u32 %v181, 512
        %v205 = vmul.u32 %v182, 512
        %v206 = vmul.u32 %v183, 512
        %v207 = vmul.u32 %v184, 512
        %v208 = vmul.u32 %v185, 512
        %v209 = vmul.u32 %v186, 512
        %v210 = vmul.u32 %v187, 512
        %v211 = vmul.u32 %v188, 512
        %v212 = vmul.u32 %v189, 512
        %v213 = vmul.u32 %v190, 512
        %v214 = vmul.u32 %v191, 512
        %v215 = vmul.u32 %v192, 512
        %v216 = vmul.u32 %v193, 512
        %v217 = vmul.u32 %v194, 512
        %v218 = vadd.s32 %v202, %v200
        %v219 = vadd.s32 %v202, %v201
        %v220 = vadd.s32 %v203, %v200
        %v221 = vadd.s32 %v203, %v201
        %v222 = vadd.s32 %v204, %v200
        %v223 = vadd.s32 %v204, %v201
        %v224 = vadd.s32 %v205, %v200
        %v225 = vadd.s32 %v205, %v201
        %v226 = vadd.s32 %v206, %v200
        %v227 = vadd.s32 %v206, %v201
        %v228 = vadd.s32 %v207, %v200
        %v229 = vadd.s32 %v207, %v201
        %v230 = vadd.s32 %v208, %v200
        %v231 = vadd.s32 %v208, %v201
        %v232 = vadd.s32 %v209, %v200
        %v233 = vadd.s32 %v209, %v201
        %v234 = vadd.s32 %v210, %v200
        %v235 = vadd.s32 %v210, %v201
        %v236 = vadd.s32 %v211, %v200
        %v237 = vadd.s32 %v211, %v201
        %v238 = vadd.s32 %v212, %v200
        %v239 = vadd.s32 %v212, %v201
        %v240 = vadd.s32 %v213, %v200
        %v241 = vadd.s32 %v213, %v201
        %v242 = vadd.s32 %v214, %v200
        %v243 = vadd.s32 %v214, %v201
        %v244 = vadd.s32 %v215, %v200
        %v245 = vadd.s32 %v215, %v201
        %v246 = vadd.s32 %v216, %v200
        %v247 = vadd.s32 %v216, %v201
        %v248 = vadd.s32 %v217, %v200
        %v249 = vadd.s32 %v217, %v201
        %s250 = sld [smem:[#allocation3]]
        %s251 = smul.u32 %s250, 2654435769
        %v252 = vstv %s251
        %v253 = vadd.s32 %v218, %v252
        %v254 = vadd.s32 %v219, %v252
        %v255 = vadd.s32 %v220, %v252
        %v256 = vadd.s32 %v221, %v252
        %v257 = vadd.s32 %v222, %v252
        %v258 = vadd.s32 %v223, %v252
        %v259 = vadd.s32 %v224, %v252
        %v260 = vadd.s32 %v225, %v252
        %v261 = vadd.s32 %v226, %v252
        %v262 = vadd.s32 %v227, %v252
        %v263 = vadd.s32 %v228, %v252
        %v264 = vadd.s32 %v229, %v252
        %v265 = vadd.s32 %v230, %v252
        %v266 = vadd.s32 %v231, %v252
        %v267 = vadd.s32 %v232, %v252
        %v268 = vadd.s32 %v233, %v252
        %v269 = vadd.s32 %v234, %v252
        %v270 = vadd.s32 %v235, %v252
        %v271 = vadd.s32 %v236, %v252
        %v272 = vadd.s32 %v237, %v252
        %v273 = vadd.s32 %v238, %v252
        %v274 = vadd.s32 %v239, %v252
        %v275 = vadd.s32 %v240, %v252
        %v276 = vadd.s32 %v241, %v252
        %v277 = vadd.s32 %v242, %v252
        %v278 = vadd.s32 %v243, %v252
        %v279 = vadd.s32 %v244, %v252
        %v280 = vadd.s32 %v245, %v252
        %v281 = vadd.s32 %v246, %v252
        %v282 = vadd.s32 %v247, %v252
        %v283 = vadd.s32 %v248, %v252
        %v284 = vadd.s32 %v249, %v252
        %v285 = vshrl.u32 %v253, 16
        %v286 = vshrl.u32 %v254, 16
        %v287 = vshrl.u32 %v255, 16
        %v288 = vshrl.u32 %v256, 16
        %v289 = vshrl.u32 %v257, 16
        %v290 = vshrl.u32 %v258, 16
        %v291 = vshrl.u32 %v259, 16
        %v292 = vshrl.u32 %v260, 16
        %v293 = vshrl.u32 %v261, 16
        %v294 = vshrl.u32 %v262, 16
        %v295 = vshrl.u32 %v263, 16
        %v296 = vshrl.u32 %v264, 16
        %v297 = vshrl.u32 %v265, 16
        %v298 = vshrl.u32 %v266, 16
        %v299 = vshrl.u32 %v267, 16
        %v300 = vshrl.u32 %v268, 16
        %v301 = vshrl.u32 %v269, 16
        %v302 = vshrl.u32 %v270, 16
        %v303 = vshrl.u32 %v271, 16
        %v304 = vshrl.u32 %v272, 16
        %v305 = vshrl.u32 %v273, 16
        %v306 = vshrl.u32 %v274, 16
        %v307 = vshrl.u32 %v275, 16
        %v308 = vshrl.u32 %v276, 16
        %v309 = vshrl.u32 %v277, 16
        %v310 = vshrl.u32 %v278, 16
        %v311 = vshrl.u32 %v279, 16
        %v312 = vshrl.u32 %v280, 16
        %v313 = vshrl.u32 %v281, 16
        %v314 = vshrl.u32 %v282, 16
        %v315 = vshrl.u32 %v283, 16
        %v316 = vshrl.u32 %v284, 16
        %v317 = vxor.u32 %v253, %v285
        %v318 = vxor.u32 %v254, %v286
        %v319 = vxor.u32 %v255, %v287
        %v320 = vxor.u32 %v256, %v288
        %v321 = vxor.u32 %v257, %v289
        %v322 = vxor.u32 %v258, %v290
        %v323 = vxor.u32 %v259, %v291
        %v324 = vxor.u32 %v260, %v292
        %v325 = vxor.u32 %v261, %v293
        %v326 = vxor.u32 %v262, %v294
        %v327 = vxor.u32 %v263, %v295
        %v328 = vxor.u32 %v264, %v296
        %v329 = vxor.u32 %v265, %v297
        %v330 = vxor.u32 %v266, %v298
        %v331 = vxor.u32 %v267, %v299
        %v332 = vxor.u32 %v268, %v300
        %v333 = vxor.u32 %v269, %v301
        %v334 = vxor.u32 %v270, %v302
        %v335 = vxor.u32 %v271, %v303
        %v336 = vxor.u32 %v272, %v304
        %v337 = vxor.u32 %v273, %v305
        %v338 = vxor.u32 %v274, %v306
        %v339 = vxor.u32 %v275, %v307
        %v340 = vxor.u32 %v276, %v308
        %v341 = vxor.u32 %v277, %v309
        %v342 = vxor.u32 %v278, %v310
        %v343 = vxor.u32 %v279, %v311
        %v344 = vxor.u32 %v280, %v312
        %v345 = vxor.u32 %v281, %v313
        %v346 = vxor.u32 %v282, %v314
        %v347 = vxor.u32 %v283, %v315
        %v348 = vxor.u32 %v284, %v316
        %v349 = vmul.u32 %v317, 2246822507
        %v350 = vmul.u32 %v318, 2246822507
        %v351 = vmul.u32 %v319, 2246822507
        %v352 = vmul.u32 %v320, 2246822507
        %v353 = vmul.u32 %v321, 2246822507
        %v354 = vmul.u32 %v322, 2246822507
        %v355 = vmul.u32 %v323, 2246822507
        %v356 = vmul.u32 %v324, 2246822507
        %v357 = vmul.u32 %v325, 2246822507
        %v358 = vmul.u32 %v326, 2246822507
        %v359 = vmul.u32 %v327, 2246822507
        %v360 = vmul.u32 %v328, 2246822507
        %v361 = vmul.u32 %v329, 2246822507
        %v362 = vmul.u32 %v330, 2246822507
        %v363 = vmul.u32 %v331, 2246822507
        %v364 = vmul.u32 %v332, 2246822507
        %v365 = vmul.u32 %v333, 2246822507
        %v366 = vmul.u32 %v334, 2246822507
        %v367 = vmul.u32 %v335, 2246822507
        %v368 = vmul.u32 %v336, 2246822507
        %v369 = vmul.u32 %v337, 2246822507
        %v370 = vmul.u32 %v338, 2246822507
        %v371 = vmul.u32 %v339, 2246822507
        %v372 = vmul.u32 %v340, 2246822507
        %v373 = vmul.u32 %v341, 2246822507
        %v374 = vmul.u32 %v342, 2246822507
        %v375 = vmul.u32 %v343, 2246822507
        %v376 = vmul.u32 %v344, 2246822507
        %v377 = vmul.u32 %v345, 2246822507
        %v378 = vmul.u32 %v346, 2246822507
        %v379 = vmul.u32 %v347, 2246822507
        %v380 = vmul.u32 %v348, 2246822507
        %v381 = vshrl.u32 %v349, 13
        %v382 = vshrl.u32 %v350, 13
        %v383 = vshrl.u32 %v351, 13
        %v384 = vshrl.u32 %v352, 13
        %v385 = vshrl.u32 %v353, 13
        %v386 = vshrl.u32 %v354, 13
        %v387 = vshrl.u32 %v355, 13
        %v388 = vshrl.u32 %v356, 13
        %v389 = vshrl.u32 %v357, 13
        %v390 = vshrl.u32 %v358, 13
        %v391 = vshrl.u32 %v359, 13
        %v392 = vshrl.u32 %v360, 13
        %v393 = vshrl.u32 %v361, 13
        %v394 = vshrl.u32 %v362, 13
        %v395 = vshrl.u32 %v363, 13
        %v396 = vshrl.u32 %v364, 13
        %v397 = vshrl.u32 %v365, 13
        %v398 = vshrl.u32 %v366, 13
        %v399 = vshrl.u32 %v367, 13
        %v400 = vshrl.u32 %v368, 13
        %v401 = vshrl.u32 %v369, 13
        %v402 = vshrl.u32 %v370, 13
        %v403 = vshrl.u32 %v371, 13
        %v404 = vshrl.u32 %v372, 13
        %v405 = vshrl.u32 %v373, 13
        %v406 = vshrl.u32 %v374, 13
        %v407 = vshrl.u32 %v375, 13
        %v408 = vshrl.u32 %v376, 13
        %v409 = vshrl.u32 %v377, 13
        %v410 = vshrl.u32 %v378, 13
        %v411 = vshrl.u32 %v379, 13
        %v412 = vshrl.u32 %v380, 13
        %v413 = vxor.u32 %v349, %v381
        %v414 = vxor.u32 %v350, %v382
        %v415 = vxor.u32 %v351, %v383
        %v416 = vxor.u32 %v352, %v384
        %v417 = vxor.u32 %v353, %v385
        %v418 = vxor.u32 %v354, %v386
        %v419 = vxor.u32 %v355, %v387
        %v420 = vxor.u32 %v356, %v388
        %v421 = vxor.u32 %v357, %v389
        %v422 = vxor.u32 %v358, %v390
        %v423 = vxor.u32 %v359, %v391
        %v424 = vxor.u32 %v360, %v392
        %v425 = vxor.u32 %v361, %v393
        %v426 = vxor.u32 %v362, %v394
        %v427 = vxor.u32 %v363, %v395
        %v428 = vxor.u32 %v364, %v396
        %v429 = vxor.u32 %v365, %v397
        %v430 = vxor.u32 %v366, %v398
        %v431 = vxor.u32 %v367, %v399
        %v432 = vxor.u32 %v368, %v400
        %v433 = vxor.u32 %v369, %v401
        %v434 = vxor.u32 %v370, %v402
        %v435 = vxor.u32 %v371, %v403
        %v436 = vxor.u32 %v372, %v404
        %v437 = vxor.u32 %v373, %v405
        %v438 = vxor.u32 %v374, %v406
        %v439 = vxor.u32 %v375, %v407
        %v440 = vxor.u32 %v376, %v408
        %v441 = vxor.u32 %v377, %v409
        %v442 = vxor.u32 %v378, %v410
        %v443 = vxor.u32 %v379, %v411
        %v444 = vxor.u32 %v380, %v412
        %v445 = vmul.u32 %v413, 3266489909
        %v446 = vmul.u32 %v414, 3266489909
        %v447 = vmul.u32 %v415, 3266489909
        %v448 = vmul.u32 %v416, 3266489909
        %v449 = vmul.u32 %v417, 3266489909
        %v450 = vmul.u32 %v418, 3266489909
        %v451 = vmul.u32 %v419, 3266489909
        %v452 = vmul.u32 %v420, 3266489909
        %v453 = vmul.u32 %v421, 3266489909
        %v454 = vmul.u32 %v422, 3266489909
        %v455 = vmul.u32 %v423, 3266489909
        %v456 = vmul.u32 %v424, 3266489909
        %v457 = vmul.u32 %v425, 3266489909
        %v458 = vmul.u32 %v426, 3266489909
        %v459 = vmul.u32 %v427, 3266489909
        %v460 = vmul.u32 %v428, 3266489909
        %v461 = vmul.u32 %v429, 3266489909
        %v462 = vmul.u32 %v430, 3266489909
        %v463 = vmul.u32 %v431, 3266489909
        %v464 = vmul.u32 %v432, 3266489909
        %v465 = vmul.u32 %v433, 3266489909
        %v466 = vmul.u32 %v434, 3266489909
        %v467 = vmul.u32 %v435, 3266489909
        %v468 = vmul.u32 %v436, 3266489909
        %v469 = vmul.u32 %v437, 3266489909
        %v470 = vmul.u32 %v438, 3266489909
        %v471 = vmul.u32 %v439, 3266489909
        %v472 = vmul.u32 %v440, 3266489909
        %v473 = vmul.u32 %v441, 3266489909
        %v474 = vmul.u32 %v442, 3266489909
        %v475 = vmul.u32 %v443, 3266489909
        %v476 = vmul.u32 %v444, 3266489909
        %v477 = vshrl.u32 %v445, 16
        %v478 = vshrl.u32 %v446, 16
        %v479 = vshrl.u32 %v447, 16
        %v480 = vshrl.u32 %v448, 16
        %v481 = vshrl.u32 %v449, 16
        %v482 = vshrl.u32 %v450, 16
        %v483 = vshrl.u32 %v451, 16
        %v484 = vshrl.u32 %v452, 16
        %v485 = vshrl.u32 %v453, 16
        %v486 = vshrl.u32 %v454, 16
        %v487 = vshrl.u32 %v455, 16
        %v488 = vshrl.u32 %v456, 16
        %v489 = vshrl.u32 %v457, 16
        %v490 = vshrl.u32 %v458, 16
        %v491 = vshrl.u32 %v459, 16
        %v492 = vshrl.u32 %v460, 16
        %v493 = vshrl.u32 %v461, 16
        %v494 = vshrl.u32 %v462, 16
        %v495 = vshrl.u32 %v463, 16
        %v496 = vshrl.u32 %v464, 16
        %v497 = vshrl.u32 %v465, 16
        %v498 = vshrl.u32 %v466, 16
        %v499 = vshrl.u32 %v467, 16
        %v500 = vshrl.u32 %v468, 16
        %v501 = vshrl.u32 %v469, 16
        %v502 = vshrl.u32 %v470, 16
        %v503 = vshrl.u32 %v471, 16
        %v504 = vshrl.u32 %v472, 16
        %v505 = vshrl.u32 %v473, 16
        %v506 = vshrl.u32 %v474, 16
        %v507 = vshrl.u32 %v475, 16
        %v508 = vshrl.u32 %v476, 16
        %v509 = vxor.u32 %v445, %v477
        %v510 = vxor.u32 %v446, %v478
        %v511 = vxor.u32 %v447, %v479
        %v512 = vxor.u32 %v448, %v480
        %v513 = vxor.u32 %v449, %v481
        %v514 = vxor.u32 %v450, %v482
        %v515 = vxor.u32 %v451, %v483
        %v516 = vxor.u32 %v452, %v484
        %v517 = vxor.u32 %v453, %v485
        %v518 = vxor.u32 %v454, %v486
        %v519 = vxor.u32 %v455, %v487
        %v520 = vxor.u32 %v456, %v488
        %v521 = vxor.u32 %v457, %v489
        %v522 = vxor.u32 %v458, %v490
        %v523 = vxor.u32 %v459, %v491
        %v524 = vxor.u32 %v460, %v492
        %v525 = vxor.u32 %v461, %v493
        %v526 = vxor.u32 %v462, %v494
        %v527 = vxor.u32 %v463, %v495
        %v528 = vxor.u32 %v464, %v496
        %v529 = vxor.u32 %v465, %v497
        %v530 = vxor.u32 %v466, %v498
        %v531 = vxor.u32 %v467, %v499
        %v532 = vxor.u32 %v468, %v500
        %v533 = vxor.u32 %v469, %v501
        %v534 = vxor.u32 %v470, %v502
        %v535 = vxor.u32 %v471, %v503
        %v536 = vxor.u32 %v472, %v504
        %v537 = vxor.u32 %v473, %v505
        %v538 = vxor.u32 %v474, %v506
        %v539 = vxor.u32 %v475, %v507
        %v540 = vxor.u32 %v476, %v508
        %v541 = vshrl.u32 %v509, 1
        %v542 = vshrl.u32 %v510, 1
        %v543 = vshrl.u32 %v511, 1
        %v544 = vshrl.u32 %v512, 1
        %v545 = vshrl.u32 %v513, 1
        %v546 = vshrl.u32 %v514, 1
        %v547 = vshrl.u32 %v515, 1
        %v548 = vshrl.u32 %v516, 1
        %v549 = vshrl.u32 %v517, 1
        %v550 = vshrl.u32 %v518, 1
        %v551 = vshrl.u32 %v519, 1
        %v552 = vshrl.u32 %v520, 1
        %v553 = vshrl.u32 %v521, 1
        %v554 = vshrl.u32 %v522, 1
        %v555 = vshrl.u32 %v523, 1
        %v556 = vshrl.u32 %v524, 1
        %v557 = vshrl.u32 %v525, 1
        %v558 = vshrl.u32 %v526, 1
        %v559 = vshrl.u32 %v527, 1
        %v560 = vshrl.u32 %v528, 1
        %v561 = vshrl.u32 %v529, 1
        %v562 = vshrl.u32 %v530, 1
        %v563 = vshrl.u32 %v531, 1
        %v564 = vshrl.u32 %v532, 1
        %v565 = vshrl.u32 %v533, 1
        %v566 = vshrl.u32 %v534, 1
        %v567 = vshrl.u32 %v535, 1
        %v568 = vshrl.u32 %v536, 1
        %v569 = vshrl.u32 %v537, 1
        %v570 = vshrl.u32 %v538, 1
        %v571 = vshrl.u32 %v539, 1
        %v572 = vshrl.u32 %v540, 1
        %v573 = vld [vmem:[%s137] sm:$0xff]
        %v574 = vld [vmem:[%s137 + $0x8] sm:$0xff]
        %v575 = vld [vmem:[%s137 + $0x10] sm:$0xff]
        %v576 = vld [vmem:[%s137 + $0x18] sm:$0xff]
        %v577 = vld [vmem:[%s137 + $0x20] sm:$0xff]
        %v578 = vld [vmem:[%s137 + $0x28] sm:$0xff]
        %v579 = vld [vmem:[%s137 + $0x30] sm:$0xff]
        %v580 = vld [vmem:[%s137 + $0x38] sm:$0xff]
        %v581 = vld [vmem:[%s137 + $0x40] sm:$0xff]
        %v582 = vld [vmem:[%s137 + $0x48] sm:$0xff]
        %v583 = vld [vmem:[%s137 + $0x50] sm:$0xff]
        %v584 = vld [vmem:[%s137 + $0x58] sm:$0xff]
        %v585 = vld [vmem:[%s137 + $0x60] sm:$0xff]
        %v586 = vld [vmem:[%s137 + $0x68] sm:$0xff]
        %v587 = vld [vmem:[%s137 + $0x70] sm:$0xff]
        %v588 = vld [vmem:[%s137 + $0x78] sm:$0xff]
        %v589 = vld [vmem:[%s137 + $0x80] sm:$0xff]
        %v590 = vld [vmem:[%s137 + $0x88] sm:$0xff]
        %v591 = vld [vmem:[%s137 + $0x90] sm:$0xff]
        %v592 = vld [vmem:[%s137 + $0x98] sm:$0xff]
        %v593 = vld [vmem:[%s137 + $0xa0] sm:$0xff]
        %v594 = vld [vmem:[%s137 + $0xa8] sm:$0xff]
        %v595 = vld [vmem:[%s137 + $0xb0] sm:$0xff]
        %v596 = vld [vmem:[%s137 + $0xb8] sm:$0xff]
        %v597 = vld [vmem:[%s137 + $0xc0] sm:$0xff]
        %v598 = vld [vmem:[%s137 + $0xc8] sm:$0xff]
        %v599 = vld [vmem:[%s137 + $0xd0] sm:$0xff]
        %v600 = vld [vmem:[%s137 + $0xd8] sm:$0xff]
        %v601 = vld [vmem:[%s137 + $0xe0] sm:$0xff]
        %v602 = vld [vmem:[%s137 + $0xe8] sm:$0xff]
        %v603 = vld [vmem:[%s137 + $0xf0] sm:$0xff]
        %v604 = vld [vmem:[%s137 + $0xf8] sm:$0xff]
        %vm605 = vcmp.lt.s32.totalorder %v541, 1073741824
        %vm606 = vcmp.lt.s32.totalorder %v542, 1073741824
        %vm607 = vcmp.lt.s32.totalorder %v543, 1073741824
        %vm608 = vcmp.lt.s32.totalorder %v544, 1073741824
        %vm609 = vcmp.lt.s32.totalorder %v545, 1073741824
        %vm610 = vcmp.lt.s32.totalorder %v546, 1073741824
        %vm611 = vcmp.lt.s32.totalorder %v547, 1073741824
        %vm612 = vcmp.lt.s32.totalorder %v548, 1073741824
        %vm613 = vcmp.lt.s32.totalorder %v549, 1073741824
        %vm614 = vcmp.lt.s32.totalorder %v550, 1073741824
        %vm615 = vcmp.lt.s32.totalorder %v551, 1073741824
        %vm616 = vcmp.lt.s32.totalorder %v552, 1073741824
        %vm617 = vcmp.lt.s32.totalorder %v553, 1073741824
        %vm618 = vcmp.lt.s32.totalorder %v554, 1073741824
        %vm619 = vcmp.lt.s32.totalorder %v555, 1073741824
        %vm620 = vcmp.lt.s32.totalorder %v556, 1073741824
        %vm621 = vcmp.lt.s32.totalorder %v557, 1073741824
        %vm622 = vcmp.lt.s32.totalorder %v558, 1073741824
        %vm623 = vcmp.lt.s32.totalorder %v559, 1073741824
        %vm624 = vcmp.lt.s32.totalorder %v560, 1073741824
        %vm625 = vcmp.lt.s32.totalorder %v561, 1073741824
        %vm626 = vcmp.lt.s32.totalorder %v562, 1073741824
        %vm627 = vcmp.lt.s32.totalorder %v563, 1073741824
        %vm628 = vcmp.lt.s32.totalorder %v564, 1073741824
        %vm629 = vcmp.lt.s32.totalorder %v565, 1073741824
        %vm630 = vcmp.lt.s32.totalorder %v566, 1073741824
        %vm631 = vcmp.lt.s32.totalorder %v567, 1073741824
        %vm632 = vcmp.lt.s32.totalorder %v568, 1073741824
        %vm633 = vcmp.lt.s32.totalorder %v569, 1073741824
        %vm634 = vcmp.lt.s32.totalorder %v570, 1073741824
        %vm635 = vcmp.lt.s32.totalorder %v571, 1073741824
        %vm636 = vcmp.lt.s32.totalorder %v572, 1073741824
        %v637 = vmul.f32 %v573, 2.0
        %v638 = vmul.f32 %v574, 2.0
        %v639 = vmul.f32 %v575, 2.0
        %v640 = vmul.f32 %v576, 2.0
        %v641 = vmul.f32 %v577, 2.0
        %v642 = vmul.f32 %v578, 2.0
        %v643 = vmul.f32 %v579, 2.0
        %v644 = vmul.f32 %v580, 2.0
        %v645 = vmul.f32 %v581, 2.0
        %v646 = vmul.f32 %v582, 2.0
        %v647 = vmul.f32 %v583, 2.0
        %v648 = vmul.f32 %v584, 2.0
        %v649 = vmul.f32 %v585, 2.0
        %v650 = vmul.f32 %v586, 2.0
        %v651 = vmul.f32 %v587, 2.0
        %v652 = vmul.f32 %v588, 2.0
        %v653 = vmul.f32 %v589, 2.0
        %v654 = vmul.f32 %v590, 2.0
        %v655 = vmul.f32 %v591, 2.0
        %v656 = vmul.f32 %v592, 2.0
        %v657 = vmul.f32 %v593, 2.0
        %v658 = vmul.f32 %v594, 2.0
        %v659 = vmul.f32 %v595, 2.0
        %v660 = vmul.f32 %v596, 2.0
        %v661 = vmul.f32 %v597, 2.0
        %v662 = vmul.f32 %v598, 2.0
        %v663 = vmul.f32 %v599, 2.0
        %v664 = vmul.f32 %v600, 2.0
        %v665 = vmul.f32 %v601, 2.0
        %v666 = vmul.f32 %v602, 2.0
        %v667 = vmul.f32 %v603, 2.0
        %v668 = vmul.f32 %v604, 2.0
        %v669 = vsel %vm605, %v637, 0.0
        %v670 = vsel %vm606, %v638, 0.0
        %v671 = vsel %vm607, %v639, 0.0
        %v672 = vsel %vm608, %v640, 0.0
        %v673 = vsel %vm609, %v641, 0.0
        %v674 = vsel %vm610, %v642, 0.0
        %v675 = vsel %vm611, %v643, 0.0
        %v676 = vsel %vm612, %v644, 0.0
        %v677 = vsel %vm613, %v645, 0.0
        %v678 = vsel %vm614, %v646, 0.0
        %v679 = vsel %vm615, %v647, 0.0
        %v680 = vsel %vm616, %v648, 0.0
        %v681 = vsel %vm617, %v649, 0.0
        %v682 = vsel %vm618, %v650, 0.0
        %v683 = vsel %vm619, %v651, 0.0
        %v684 = vsel %vm620, %v652, 0.0
        %v685 = vsel %vm621, %v653, 0.0
        %v686 = vsel %vm622, %v654, 0.0
        %v687 = vsel %vm623, %v655, 0.0
        %v688 = vsel %vm624, %v656, 0.0
        %v689 = vsel %vm625, %v657, 0.0
        %v690 = vsel %vm626, %v658, 0.0
        %v691 = vsel %vm627, %v659, 0.0
        %v692 = vsel %vm628, %v660, 0.0
        %v693 = vsel %vm629, %v661, 0.0
        %v694 = vsel %vm630, %v662, 0.0
        %v695 = vsel %vm631, %v663, 0.0
        %v696 = vsel %vm632, %v664, 0.0
        %v697 = vsel %vm633, %v665, 0.0
        %v698 = vsel %vm634, %v666, 0.0
        %v699 = vsel %vm635, %v667, 0.0
        %v700 = vsel %vm636, %v668, 0.0
        %701 = vst [vmem:[%s155] sm:$0xff] %v669
        %702 = vst [vmem:[%s155 + $0x8] sm:$0xff] %v670
        %703 = vst [vmem:[%s155 + $0x10] sm:$0xff] %v671
        %704 = vst [vmem:[%s155 + $0x18] sm:$0xff] %v672
        %705 = vst [vmem:[%s155 + $0x20] sm:$0xff] %v673
        %706 = vst [vmem:[%s155 + $0x28] sm:$0xff] %v674
        %707 = vst [vmem:[%s155 + $0x30] sm:$0xff] %v675
        %708 = vst [vmem:[%s155 + $0x38] sm:$0xff] %v676
        %709 = vst [vmem:[%s155 + $0x40] sm:$0xff] %v677
        %710 = vst [vmem:[%s155 + $0x48] sm:$0xff] %v678
        %711 = vst [vmem:[%s155 + $0x50] sm:$0xff] %v679
        %712 = vst [vmem:[%s155 + $0x58] sm:$0xff] %v680
        %713 = vst [vmem:[%s155 + $0x60] sm:$0xff] %v681
        %714 = vst [vmem:[%s155 + $0x68] sm:$0xff] %v682
        %715 = vst [vmem:[%s155 + $0x70] sm:$0xff] %v683
        %716 = vst [vmem:[%s155 + $0x78] sm:$0xff] %v684
        %717 = vst [vmem:[%s155 + $0x80] sm:$0xff] %v685
        %718 = vst [vmem:[%s155 + $0x88] sm:$0xff] %v686
        %719 = vst [vmem:[%s155 + $0x90] sm:$0xff] %v687
        %720 = vst [vmem:[%s155 + $0x98] sm:$0xff] %v688
        %721 = vst [vmem:[%s155 + $0xa0] sm:$0xff] %v689
        %722 = vst [vmem:[%s155 + $0xa8] sm:$0xff] %v690
        %723 = vst [vmem:[%s155 + $0xb0] sm:$0xff] %v691
        %724 = vst [vmem:[%s155 + $0xb8] sm:$0xff] %v692
        %725 = vst [vmem:[%s155 + $0xc0] sm:$0xff] %v693
        %726 = vst [vmem:[%s155 + $0xc8] sm:$0xff] %v694
        %727 = vst [vmem:[%s155 + $0xd0] sm:$0xff] %v695
        %728 = vst [vmem:[%s155 + $0xd8] sm:$0xff] %v696
        %729 = vst [vmem:[%s155 + $0xe0] sm:$0xff] %v697
        %730 = vst [vmem:[%s155 + $0xe8] sm:$0xff] %v698
        %731 = vst [vmem:[%s155 + $0xf0] sm:$0xff] %v699
        %732 = vst [vmem:[%s155 + $0xf8] sm:$0xff] %v700
        %s733 = sand.u32 %s70, 1
        %s734 = scalar_lea.sflag [#allocation6], %s733
        %s735 = sand.u32 %s70, 1
        %s736 = smul.addr %s735, 256
        %s737 = scalar_lea.vmem [#allocation7], %s736
        // Predicated region
        $region29: #{tpu_custom_call.1} parent=23 // pred_check
          %p738 = pneg %p80
        $region30: #{tpu_custom_call.1} parent=23 // pred_check_branch
          %740 = sbr.rel (%p738) target = $region32
        $region31: #{tpu_custom_call.1} parent=23 // pred_region
          %s741 = smul.u32 16, %s24
          %s742 = smul.u32 2, %s25
          %s744 = ssub.s32 4096, 4096
          %745 = vsyncadd %s734, %s744
          %s746 = smul.addr %s741, 4
          %s747 = sadd.s32 %s742, %s746
          %s748 = smul.addr %s747, 128
          %s749 = scalar_lea.hbm %s2, %s748
          %s750 = sshll.u32 %s737, 4
          %s751 = int_to_ptr.vmem [resolvable:$true] %s750
          %756 = dma.vmem_to_hbm [thread:$0]  %s751, 4096, %s749, %s734, 256, 512, 16
        $region32: #{tpu_custom_call.1} parent=23 // pred_fallthru
          _
      $region24: #{tpu_custom_call.1} parent=5 // pred_fallthru
        _
      %p757 = scmp.le.s32.totalorder 2, %s15
      // Predicated region
      $region33: #{tpu_custom_call.1} parent=5 // pred_check
        %p758 = pneg %p757
      $region34: #{tpu_custom_call.1} parent=5 // pred_check_branch
        %760 = sbr.rel (%p758) target = $region36
      $region35: #{tpu_custom_call.1} parent=5 // pred_region
        %s761 = ssub.s32 %s15, 2
        // Predicated region
        $region37: #{tpu_custom_call.1} parent=35 // pred_check
          %p762 = pneg %p86
        $region38: #{tpu_custom_call.1} parent=35 // pred_check_branch
          %764 = sbr.rel (%p762) target = $region40
        $region39: #{tpu_custom_call.1} parent=35 // pred_region
          %s765 = sand.u32 %s71, 1
          %s766 = scalar_lea.sflag [#allocation6], %s765
          %s767 = sand.u32 %s71, 1
          %s768 = smul.addr %s767, 256
          %s769 = scalar_lea.vmem [#allocation7], %s768
          %770 = dma.done %s766, 4096
        $region40: #{tpu_custom_call.1} parent=35 // pred_fallthru
          _
      $region36: #{tpu_custom_call.1} parent=5 // pred_fallthru
        _
    $region6: #{tpu_custom_call.1} parent=1 // loop_footer
      %s19 = sadd.s32 1, %s15
    $region7: #{tpu_custom_call.1} parent=1 // loop_footer_branch
      %14 = sbr.rel target = $region3
    $region8: #{tpu_custom_call.1} parent=1 // loop_exit
      _
    %771 = vsyncpa [#allocation5], 1
    %s772 = scalar_lea.sflag [#allocation5], 1
    %773 = vsyncpa %s772, 1
    %774 = vsyncpa [#allocation6], 1
    %s775 = scalar_lea.sflag [#allocation6], 1
    %776 = vsyncpa %s775, 1

</llo_original>
